<compile_context>
chip_gen: v7x
topology: tpu7x:2x2x1
jax: 0.10.0
libtpu: 0.0.40
codegen_flags: <defaults>
</compile_context>

<pallas_src>
import math

import jax
import jax.numpy as jnp
from jax.experimental import pallas as pl
from jax.experimental.pallas import tpu as pltpu

IN1, OUT1 = 4, 4
IN2, OUT2 = 4, 7

# Offsets inside the packed parameter slab (torch [out, in] row-major layout).
_W1_OFF = 0
_B1_OFF = _W1_OFF + OUT1 * IN1          # 16
_W2_OFF = _B1_OFF + OUT1                # 20
_B2_OFF = _W2_OFF + OUT2 * IN2          # 48
_N_PARAMS = _B2_OFF + OUT2              # 55
_N_PARAMS_PADDED = 64


def _mlp_kernel(params_ref, xT_ref, outT_ref):
    # 4 lane-dense input rows, each [1, TB].
    x_rows = [xT_ref[pl.ds(k, 1), :] for k in range(IN1)]

    # fc1 + ReLU: unrolled VPU broadcast-MACs (K=4), weights are SMEM scalars.
    h_rows = []
    for j in range(OUT1):
        acc = x_rows[0] * params_ref[_W1_OFF + j * IN1 + 0]
        for k in range(1, IN1):
            acc = acc + x_rows[k] * params_ref[_W1_OFF + j * IN1 + k]
        acc = acc + params_ref[_B1_OFF + j]
        h_rows.append(jnp.maximum(acc, jnp.float32(0.0)))

    # fc2: 7 lane-dense output rows, written directly (unmasked lane-wide stores).
    for i in range(OUT2):
        o = h_rows[0] * params_ref[_W2_OFF + i * IN2 + 0]
        for j in range(1, IN2):
            o = o + h_rows[j] * params_ref[_W2_OFF + i * IN2 + j]
        o = o + params_ref[_B2_OFF + i]
        outT_ref[pl.ds(i, 1), :] = o.astype(outT_ref.dtype)


def _pack_params(w1, b1, w2, b2):
    flat = jnp.concatenate(
        [w1.reshape(-1), b1.reshape(-1), w2.reshape(-1), b2.reshape(-1)]
    ).astype(jnp.float32)
    return jnp.pad(flat, (0, _N_PARAMS_PADDED - _N_PARAMS))


def network_softmax_forward(x, w1, b1, w2, b2, *, tb=512):
    """x: [B, 4] f32. w1:[4,4], b1:[4], w2:[7,4], b2:[7] (torch [out, in] layout).
    Returns (out [B, 7], x), matching the torch module."""
    B = x.shape[0]
    n_tiles = pl.cdiv(B, tb)
    b_pad = n_tiles * tb

    # Layout plumbing in the wrapper: batch onto the lane axis, padded to a TB multiple.
    xT = jnp.zeros((IN1, b_pad), jnp.float32).at[:, :B].set(x.T.astype(jnp.float32))
    params = _pack_params(w1, b1, w2, b2)

    outT = pl.pallas_call(
        _mlp_kernel,
        out_shape=jax.ShapeDtypeStruct((OUT2, b_pad), x.dtype),
        grid_spec=pltpu.PrefetchScalarGridSpec(
            num_scalar_prefetch=1,  # packed params -> SMEM, one transfer
            grid=(n_tiles,),
            in_specs=[pl.BlockSpec((IN1, tb), lambda i, p: (0, i))],
            out_specs=pl.BlockSpec((OUT2, tb), lambda i, p: (0, i)),
        ),
        compiler_params=pltpu.CompilerParams(
            dimension_semantics=("parallel",),  # batch tiles are independent (megacore on v7x)
        ),
    )(params, xT)

    out = outT[:, :B].T
    return out, x


def init_params(key):
    """Deterministic init mirroring nn.Linear's U(-1/sqrt(fan_in), 1/sqrt(fan_in))."""
    k1, k2, k3, k4 = jax.random.split(key, 4)
    bnd1 = 1.0 / math.sqrt(IN1)
    bnd2 = 1.0 / math.sqrt(IN2)
    w1 = jax.random.uniform(k1, (OUT1, IN1), jnp.float32, -bnd1, bnd1)
    b1 = jax.random.uniform(k2, (OUT1,), jnp.float32, -bnd1, bnd1)
    w2 = jax.random.uniform(k3, (OUT2, IN2), jnp.float32, -bnd2, bnd2)
    b2 = jax.random.uniform(k4, (OUT2,), jnp.float32, -bnd2, bnd2)
    return w1, b1, w2, b2


def _reference(x, w1, b1, w2, b2):
    h = jnp.maximum(x @ w1.T + b1, 0.0)
    return h @ w2.T + b2


if __name__ == "__main__":
    key = jax.random.PRNGKey(0)
    kx, kp, kx2 = jax.random.split(key, 3)
    w1, b1, w2, b2 = init_params(kp)

    # Main case: batch spanning multiple lane-dense tiles (2 grid steps at tb=512).
    batch = 1024
    x = jax.random.normal(kx, (batch, IN1), jnp.float32)
    out, x_pass = network_softmax_forward(x, w1, b1, w2, b2, tb=512)
    out = jax.block_until_ready(out)
    x_pass = jax.block_until_ready(x_pass)

    assert out.shape == (batch, OUT2)
    assert x_pass.shape == (batch, IN1)
    assert jnp.allclose(out, _reference(x, w1, b1, w2, b2), atol=1e-5, rtol=1e-5)
    assert jnp.array_equal(x_pass, x)

    # Tiny / ragged batch (exercises the lane-padding path).
    x_small = jax.random.normal(kx2, (5, IN1), jnp.float32)
    out_s, _ = network_softmax_forward(x_small, w1, b1, w2, b2, tb=512)
    out_s = jax.block_until_ready(out_s)
    assert out_s.shape == (5, OUT2)
    assert jnp.allclose(out_s, _reference(x_small, w1, b1, w2, b2), atol=1e-5, rtol=1e-5)

    print("KERNEL_OK")
</pallas_src>

<mosaic_0001>
module attributes {stable_mosaic.version = 11 : i64} {
  func.func @_mlp_kernel(%arg0: i32, %arg1: memref<64xf32, #tpu.memory_space<smem>>, %arg2: memref<4x512xf32, #tpu.memory_space<vmem>>, %arg3: memref<7x512xf32, #tpu.memory_space<vmem>>) attributes {dimension_semantics = [#tpu.dimension_semantics<parallel>], iteration_bounds = array<i64: 2>, scalar_prefetch = 1 : i64, scratch_operands = 0 : i64, tpu.core_type = #tpu.core_type<tc>, window_params = [{transform_indices = @transform_0, window_bounds = array<i64: 4, 512>}, {transform_indices = @transform_1, window_bounds = array<i64: 7, 512>}]} {
    %c0 = arith.constant 0 : index
    %c0_0 = arith.constant 0 : index
    %0 = vector.load %arg2[%c0, %c0_0] : memref<4x512xf32, #tpu.memory_space<vmem>>, vector<1x512xf32>
    %c1 = arith.constant 1 : index
    %c0_1 = arith.constant 0 : index
    %1 = vector.load %arg2[%c1, %c0_1] : memref<4x512xf32, #tpu.memory_space<vmem>>, vector<1x512xf32>
    %c2 = arith.constant 2 : index
    %c0_2 = arith.constant 0 : index
    %2 = vector.load %arg2[%c2, %c0_2] : memref<4x512xf32, #tpu.memory_space<vmem>>, vector<1x512xf32>
    %c3 = arith.constant 3 : index
    %c0_3 = arith.constant 0 : index
    %3 = vector.load %arg2[%c3, %c0_3] : memref<4x512xf32, #tpu.memory_space<vmem>>, vector<1x512xf32>
    %c0_4 = arith.constant 0 : index
    %4 = memref.load %arg1[%c0_4] : memref<64xf32, #tpu.memory_space<smem>>
    %5 = vector.broadcast %4 : f32 to vector<1x512xf32>
    %6 = arith.mulf %0, %5 : vector<1x512xf32>
    %c1_5 = arith.constant 1 : index
    %7 = memref.load %arg1[%c1_5] : memref<64xf32, #tpu.memory_space<smem>>
    %8 = vector.broadcast %7 : f32 to vector<1x512xf32>
    %9 = arith.mulf %1, %8 : vector<1x512xf32>
    %10 = arith.addf %6, %9 : vector<1x512xf32>
    %c2_6 = arith.constant 2 : index
    %11 = memref.load %arg1[%c2_6] : memref<64xf32, #tpu.memory_space<smem>>
    %12 = vector.broadcast %11 : f32 to vector<1x512xf32>
    %13 = arith.mulf %2, %12 : vector<1x512xf32>
    %14 = arith.addf %10, %13 : vector<1x512xf32>
    %c3_7 = arith.constant 3 : index
    %15 = memref.load %arg1[%c3_7] : memref<64xf32, #tpu.memory_space<smem>>
    %16 = vector.broadcast %15 : f32 to vector<1x512xf32>
    %17 = arith.mulf %3, %16 : vector<1x512xf32>
    %18 = arith.addf %14, %17 : vector<1x512xf32>
    %c16 = arith.constant 16 : index
    %19 = memref.load %arg1[%c16] : memref<64xf32, #tpu.memory_space<smem>>
    %20 = vector.broadcast %19 : f32 to vector<1x512xf32>
    %21 = arith.addf %18, %20 : vector<1x512xf32>
    %cst = arith.constant 0.000000e+00 : f32
    %22 = vector.broadcast %cst : f32 to vector<1x512xf32>
    %23 = arith.maximumf %21, %22 : vector<1x512xf32>
    %c4 = arith.constant 4 : index
    %24 = memref.load %arg1[%c4] : memref<64xf32, #tpu.memory_space<smem>>
    %25 = vector.broadcast %24 : f32 to vector<1x512xf32>
    %26 = arith.mulf %0, %25 : vector<1x512xf32>
    %c5 = arith.constant 5 : index
    %27 = memref.load %arg1[%c5] : memref<64xf32, #tpu.memory_space<smem>>
    %28 = vector.broadcast %27 : f32 to vector<1x512xf32>
    %29 = arith.mulf %1, %28 : vector<1x512xf32>
    %30 = arith.addf %26, %29 : vector<1x512xf32>
    %c6 = arith.constant 6 : index
    %31 = memref.load %arg1[%c6] : memref<64xf32, #tpu.memory_space<smem>>
    %32 = vector.broadcast %31 : f32 to vector<1x512xf32>
    %33 = arith.mulf %2, %32 : vector<1x512xf32>
    %34 = arith.addf %30, %33 : vector<1x512xf32>
    %c7 = arith.constant 7 : index
    %35 = memref.load %arg1[%c7] : memref<64xf32, #tpu.memory_space<smem>>
    %36 = vector.broadcast %35 : f32 to vector<1x512xf32>
    %37 = arith.mulf %3, %36 : vector<1x512xf32>
    %38 = arith.addf %34, %37 : vector<1x512xf32>
    %c17 = arith.constant 17 : index
    %39 = memref.load %arg1[%c17] : memref<64xf32, #tpu.memory_space<smem>>
    %40 = vector.broadcast %39 : f32 to vector<1x512xf32>
    %41 = arith.addf %38, %40 : vector<1x512xf32>
    %cst_8 = arith.constant 0.000000e+00 : f32
    %42 = vector.broadcast %cst_8 : f32 to vector<1x512xf32>
    %43 = arith.maximumf %41, %42 : vector<1x512xf32>
    %c8 = arith.constant 8 : index
    %44 = memref.load %arg1[%c8] : memref<64xf32, #tpu.memory_space<smem>>
    %45 = vector.broadcast %44 : f32 to vector<1x512xf32>
    %46 = arith.mulf %0, %45 : vector<1x512xf32>
    %c9 = arith.constant 9 : index
    %47 = memref.load %arg1[%c9] : memref<64xf32, #tpu.memory_space<smem>>
    %48 = vector.broadcast %47 : f32 to vector<1x512xf32>
    %49 = arith.mulf %1, %48 : vector<1x512xf32>
    %50 = arith.addf %46, %49 : vector<1x512xf32>
    %c10 = arith.constant 10 : index
    %51 = memref.load %arg1[%c10] : memref<64xf32, #tpu.memory_space<smem>>
    %52 = vector.broadcast %51 : f32 to vector<1x512xf32>
    %53 = arith.mulf %2, %52 : vector<1x512xf32>
    %54 = arith.addf %50, %53 : vector<1x512xf32>
    %c11 = arith.constant 11 : index
    %55 = memref.load %arg1[%c11] : memref<64xf32, #tpu.memory_space<smem>>
    %56 = vector.broadcast %55 : f32 to vector<1x512xf32>
    %57 = arith.mulf %3, %56 : vector<1x512xf32>
    %58 = arith.addf %54, %57 : vector<1x512xf32>
    %c18 = arith.constant 18 : index
    %59 = memref.load %arg1[%c18] : memref<64xf32, #tpu.memory_space<smem>>
    %60 = vector.broadcast %59 : f32 to vector<1x512xf32>
    %61 = arith.addf %58, %60 : vector<1x512xf32>
    %cst_9 = arith.constant 0.000000e+00 : f32
    %62 = vector.broadcast %cst_9 : f32 to vector<1x512xf32>
    %63 = arith.maximumf %61, %62 : vector<1x512xf32>
    %c12 = arith.constant 12 : index
    %64 = memref.load %arg1[%c12] : memref<64xf32, #tpu.memory_space<smem>>
    %65 = vector.broadcast %64 : f32 to vector<1x512xf32>
    %66 = arith.mulf %0, %65 : vector<1x512xf32>
    %c13 = arith.constant 13 : index
    %67 = memref.load %arg1[%c13] : memref<64xf32, #tpu.memory_space<smem>>
    %68 = vector.broadcast %67 : f32 to vector<1x512xf32>
    %69 = arith.mulf %1, %68 : vector<1x512xf32>
    %70 = arith.addf %66, %69 : vector<1x512xf32>
    %c14 = arith.constant 14 : index
    %71 = memref.load %arg1[%c14] : memref<64xf32, #tpu.memory_space<smem>>
    %72 = vector.broadcast %71 : f32 to vector<1x512xf32>
    %73 = arith.mulf %2, %72 : vector<1x512xf32>
    %74 = arith.addf %70, %73 : vector<1x512xf32>
    %c15 = arith.constant 15 : index
    %75 = memref.load %arg1[%c15] : memref<64xf32, #tpu.memory_space<smem>>
    %76 = vector.broadcast %75 : f32 to vector<1x512xf32>
    %77 = arith.mulf %3, %76 : vector<1x512xf32>
    %78 = arith.addf %74, %77 : vector<1x512xf32>
    %c19 = arith.constant 19 : index
    %79 = memref.load %arg1[%c19] : memref<64xf32, #tpu.memory_space<smem>>
    %80 = vector.broadcast %79 : f32 to vector<1x512xf32>
    %81 = arith.addf %78, %80 : vector<1x512xf32>
    %cst_10 = arith.constant 0.000000e+00 : f32
    %82 = vector.broadcast %cst_10 : f32 to vector<1x512xf32>
    %83 = arith.maximumf %81, %82 : vector<1x512xf32>
    %c20 = arith.constant 20 : index
    %84 = memref.load %arg1[%c20] : memref<64xf32, #tpu.memory_space<smem>>
    %85 = vector.broadcast %84 : f32 to vector<1x512xf32>
    %86 = arith.mulf %23, %85 : vector<1x512xf32>
    %c21 = arith.constant 21 : index
    %87 = memref.load %arg1[%c21] : memref<64xf32, #tpu.memory_space<smem>>
    %88 = vector.broadcast %87 : f32 to vector<1x512xf32>
    %89 = arith.mulf %43, %88 : vector<1x512xf32>
    %90 = arith.addf %86, %89 : vector<1x512xf32>
    %c22 = arith.constant 22 : index
    %91 = memref.load %arg1[%c22] : memref<64xf32, #tpu.memory_space<smem>>
    %92 = vector.broadcast %91 : f32 to vector<1x512xf32>
    %93 = arith.mulf %63, %92 : vector<1x512xf32>
    %94 = arith.addf %90, %93 : vector<1x512xf32>
    %c23 = arith.constant 23 : index
    %95 = memref.load %arg1[%c23] : memref<64xf32, #tpu.memory_space<smem>>
    %96 = vector.broadcast %95 : f32 to vector<1x512xf32>
    %97 = arith.mulf %83, %96 : vector<1x512xf32>
    %98 = arith.addf %94, %97 : vector<1x512xf32>
    %c48 = arith.constant 48 : index
    %99 = memref.load %arg1[%c48] : memref<64xf32, #tpu.memory_space<smem>>
    %100 = vector.broadcast %99 : f32 to vector<1x512xf32>
    %101 = arith.addf %98, %100 : vector<1x512xf32>
    %c0_11 = arith.constant 0 : index
    %c0_12 = arith.constant 0 : index
    %102 = vector.load %arg3[%c0_11, %c0_12] : memref<7x512xf32, #tpu.memory_space<vmem>>, vector<1x512xf32>
    tpu.vector_store %arg3[%c0_11, %c0_12], %101 {strides = array<i32>} : memref<7x512xf32, #tpu.memory_space<vmem>>, vector<1x512xf32>,
    %c24 = arith.constant 24 : index
    %103 = memref.load %arg1[%c24] : memref<64xf32, #tpu.memory_space<smem>>
    %104 = vector.broadcast %103 : f32 to vector<1x512xf32>
    %105 = arith.mulf %23, %104 : vector<1x512xf32>
    %c25 = arith.constant 25 : index
    %106 = memref.load %arg1[%c25] : memref<64xf32, #tpu.memory_space<smem>>
    %107 = vector.broadcast %106 : f32 to vector<1x512xf32>
    %108 = arith.mulf %43, %107 : vector<1x512xf32>
    %109 = arith.addf %105, %108 : vector<1x512xf32>
    %c26 = arith.constant 26 : index
    %110 = memref.load %arg1[%c26] : memref<64xf32, #tpu.memory_space<smem>>
    %111 = vector.broadcast %110 : f32 to vector<1x512xf32>
    %112 = arith.mulf %63, %111 : vector<1x512xf32>
    %113 = arith.addf %109, %112 : vector<1x512xf32>
    %c27 = arith.constant 27 : index
    %114 = memref.load %arg1[%c27] : memref<64xf32, #tpu.memory_space<smem>>
    %115 = vector.broadcast %114 : f32 to vector<1x512xf32>
    %116 = arith.mulf %83, %115 : vector<1x512xf32>
    %117 = arith.addf %113, %116 : vector<1x512xf32>
    %c49 = arith.constant 49 : index
    %118 = memref.load %arg1[%c49] : memref<64xf32, #tpu.memory_space<smem>>
    %119 = vector.broadcast %118 : f32 to vector<1x512xf32>
    %120 = arith.addf %117, %119 : vector<1x512xf32>
    %c1_13 = arith.constant 1 : index
    %c0_14 = arith.constant 0 : index
    %121 = vector.load %arg3[%c1_13, %c0_14] : memref<7x512xf32, #tpu.memory_space<vmem>>, vector<1x512xf32>
    tpu.vector_store %arg3[%c1_13, %c0_14], %120 {strides = array<i32>} : memref<7x512xf32, #tpu.memory_space<vmem>>, vector<1x512xf32>,
    %c28 = arith.constant 28 : index
    %122 = memref.load %arg1[%c28] : memref<64xf32, #tpu.memory_space<smem>>
    %123 = vector.broadcast %122 : f32 to vector<1x512xf32>
    %124 = arith.mulf %23, %123 : vector<1x512xf32>
    %c29 = arith.constant 29 : index
    %125 = memref.load %arg1[%c29] : memref<64xf32, #tpu.memory_space<smem>>
    %126 = vector.broadcast %125 : f32 to vector<1x512xf32>
    %127 = arith.mulf %43, %126 : vector<1x512xf32>
    %128 = arith.addf %124, %127 : vector<1x512xf32>
    %c30 = arith.constant 30 : index
    %129 = memref.load %arg1[%c30] : memref<64xf32, #tpu.memory_space<smem>>
    %130 = vector.broadcast %129 : f32 to vector<1x512xf32>
    %131 = arith.mulf %63, %130 : vector<1x512xf32>
    %132 = arith.addf %128, %131 : vector<1x512xf32>
    %c31 = arith.constant 31 : index
    %133 = memref.load %arg1[%c31] : memref<64xf32, #tpu.memory_space<smem>>
    %134 = vector.broadcast %133 : f32 to vector<1x512xf32>
    %135 = arith.mulf %83, %134 : vector<1x512xf32>
    %136 = arith.addf %132, %135 : vector<1x512xf32>
    %c50 = arith.constant 50 : index
    %137 = memref.load %arg1[%c50] : memref<64xf32, #tpu.memory_space<smem>>
    %138 = vector.broadcast %137 : f32 to vector<1x512xf32>
    %139 = arith.addf %136, %138 : vector<1x512xf32>
    %c2_15 = arith.constant 2 : index
    %c0_16 = arith.constant 0 : index
    %140 = vector.load %arg3[%c2_15, %c0_16] : memref<7x512xf32, #tpu.memory_space<vmem>>, vector<1x512xf32>
    tpu.vector_store %arg3[%c2_15, %c0_16], %139 {strides = array<i32>} : memref<7x512xf32, #tpu.memory_space<vmem>>, vector<1x512xf32>,
    %c32 = arith.constant 32 : index
    %141 = memref.load %arg1[%c32] : memref<64xf32, #tpu.memory_space<smem>>
    %142 = vector.broadcast %141 : f32 to vector<1x512xf32>
    %143 = arith.mulf %23, %142 : vector<1x512xf32>
    %c33 = arith.constant 33 : index
    %144 = memref.load %arg1[%c33] : memref<64xf32, #tpu.memory_space<smem>>
    %145 = vector.broadcast %144 : f32 to vector<1x512xf32>
    %146 = arith.mulf %43, %145 : vector<1x512xf32>
    %147 = arith.addf %143, %146 : vector<1x512xf32>
    %c34 = arith.constant 34 : index
    %148 = memref.load %arg1[%c34] : memref<64xf32, #tpu.memory_space<smem>>
    %149 = vector.broadcast %148 : f32 to vector<1x512xf32>
    %150 = arith.mulf %63, %149 : vector<1x512xf32>
    %151 = arith.addf %147, %150 : vector<1x512xf32>
    %c35 = arith.constant 35 : index
    %152 = memref.load %arg1[%c35] : memref<64xf32, #tpu.memory_space<smem>>
    %153 = vector.broadcast %152 : f32 to vector<1x512xf32>
    %154 = arith.mulf %83, %153 : vector<1x512xf32>
    %155 = arith.addf %151, %154 : vector<1x512xf32>
    %c51 = arith.constant 51 : index
    %156 = memref.load %arg1[%c51] : memref<64xf32, #tpu.memory_space<smem>>
    %157 = vector.broadcast %156 : f32 to vector<1x512xf32>
    %158 = arith.addf %155, %157 : vector<1x512xf32>
    %c3_17 = arith.constant 3 : index
    %c0_18 = arith.constant 0 : index
    %159 = vector.load %arg3[%c3_17, %c0_18] : memref<7x512xf32, #tpu.memory_space<vmem>>, vector<1x512xf32>
    tpu.vector_store %arg3[%c3_17, %c0_18], %158 {strides = array<i32>} : memref<7x512xf32, #tpu.memory_space<vmem>>, vector<1x512xf32>,
    %c36 = arith.constant 36 : index
    %160 = memref.load %arg1[%c36] : memref<64xf32, #tpu.memory_space<smem>>
    %161 = vector.broadcast %160 : f32 to vector<1x512xf32>
    %162 = arith.mulf %23, %161 : vector<1x512xf32>
    %c37 = arith.constant 37 : index
    %163 = memref.load %arg1[%c37] : memref<64xf32, #tpu.memory_space<smem>>
    %164 = vector.broadcast %163 : f32 to vector<1x512xf32>
    %165 = arith.mulf %43, %164 : vector<1x512xf32>
    %166 = arith.addf %162, %165 : vector<1x512xf32>
    %c38 = arith.constant 38 : index
    %167 = memref.load %arg1[%c38] : memref<64xf32, #tpu.memory_space<smem>>
    %168 = vector.broadcast %167 : f32 to vector<1x512xf32>
    %169 = arith.mulf %63, %168 : vector<1x512xf32>
    %170 = arith.addf %166, %169 : vector<1x512xf32>
    %c39 = arith.constant 39 : index
    %171 = memref.load %arg1[%c39] : memref<64xf32, #tpu.memory_space<smem>>
    %172 = vector.broadcast %171 : f32 to vector<1x512xf32>
    %173 = arith.mulf %83, %172 : vector<1x512xf32>
    %174 = arith.addf %170, %173 : vector<1x512xf32>
    %c52 = arith.constant 52 : index
    %175 = memref.load %arg1[%c52] : memref<64xf32, #tpu.memory_space<smem>>
    %176 = vector.broadcast %175 : f32 to vector<1x512xf32>
    %177 = arith.addf %174, %176 : vector<1x512xf32>
    %c4_19 = arith.constant 4 : index
    %c0_20 = arith.constant 0 : index
    %178 = vector.load %arg3[%c4_19, %c0_20] : memref<7x512xf32, #tpu.memory_space<vmem>>, vector<1x512xf32>
    tpu.vector_store %arg3[%c4_19, %c0_20], %177 {strides = array<i32>} : memref<7x512xf32, #tpu.memory_space<vmem>>, vector<1x512xf32>,
    %c40 = arith.constant 40 : index
    %179 = memref.load %arg1[%c40] : memref<64xf32, #tpu.memory_space<smem>>
    %180 = vector.broadcast %179 : f32 to vector<1x512xf32>
    %181 = arith.mulf %23, %180 : vector<1x512xf32>
    %c41 = arith.constant 41 : index
    %182 = memref.load %arg1[%c41] : memref<64xf32, #tpu.memory_space<smem>>
    %183 = vector.broadcast %182 : f32 to vector<1x512xf32>
    %184 = arith.mulf %43, %183 : vector<1x512xf32>
    %185 = arith.addf %181, %184 : vector<1x512xf32>
    %c42 = arith.constant 42 : index
    %186 = memref.load %arg1[%c42] : memref<64xf32, #tpu.memory_space<smem>>
    %187 = vector.broadcast %186 : f32 to vector<1x512xf32>
    %188 = arith.mulf %63, %187 : vector<1x512xf32>
    %189 = arith.addf %185, %188 : vector<1x512xf32>
    %c43 = arith.constant 43 : index
    %190 = memref.load %arg1[%c43] : memref<64xf32, #tpu.memory_space<smem>>
    %191 = vector.broadcast %190 : f32 to vector<1x512xf32>
    %192 = arith.mulf %83, %191 : vector<1x512xf32>
    %193 = arith.addf %189, %192 : vector<1x512xf32>
    %c53 = arith.constant 53 : index
    %194 = memref.load %arg1[%c53] : memref<64xf32, #tpu.memory_space<smem>>
    %195 = vector.broadcast %194 : f32 to vector<1x512xf32>
    %196 = arith.addf %193, %195 : vector<1x512xf32>
    %c5_21 = arith.constant 5 : index
    %c0_22 = arith.constant 0 : index
    %197 = vector.load %arg3[%c5_21, %c0_22] : memref<7x512xf32, #tpu.memory_space<vmem>>, vector<1x512xf32>
    tpu.vector_store %arg3[%c5_21, %c0_22], %196 {strides = array<i32>} : memref<7x512xf32, #tpu.memory_space<vmem>>, vector<1x512xf32>,
    %c44 = arith.constant 44 : index
    %198 = memref.load %arg1[%c44] : memref<64xf32, #tpu.memory_space<smem>>
    %199 = vector.broadcast %198 : f32 to vector<1x512xf32>
    %200 = arith.mulf %23, %199 : vector<1x512xf32>
    %c45 = arith.constant 45 : index
    %201 = memref.load %arg1[%c45] : memref<64xf32, #tpu.memory_space<smem>>
    %202 = vector.broadcast %201 : f32 to vector<1x512xf32>
    %203 = arith.mulf %43, %202 : vector<1x512xf32>
    %204 = arith.addf %200, %203 : vector<1x512xf32>
    %c46 = arith.constant 46 : index
    %205 = memref.load %arg1[%c46] : memref<64xf32, #tpu.memory_space<smem>>
    %206 = vector.broadcast %205 : f32 to vector<1x512xf32>
    %207 = arith.mulf %63, %206 : vector<1x512xf32>
    %208 = arith.addf %204, %207 : vector<1x512xf32>
    %c47 = arith.constant 47 : index
    %209 = memref.load %arg1[%c47] : memref<64xf32, #tpu.memory_space<smem>>
    %210 = vector.broadcast %209 : f32 to vector<1x512xf32>
    %211 = arith.mulf %83, %210 : vector<1x512xf32>
    %212 = arith.addf %208, %211 : vector<1x512xf32>
    %c54 = arith.constant 54 : index
    %213 = memref.load %arg1[%c54] : memref<64xf32, #tpu.memory_space<smem>>
    %214 = vector.broadcast %213 : f32 to vector<1x512xf32>
    %215 = arith.addf %212, %214 : vector<1x512xf32>
    %c6_23 = arith.constant 6 : index
    %c0_24 = arith.constant 0 : index
    %216 = vector.load %arg3[%c6_23, %c0_24] : memref<7x512xf32, #tpu.memory_space<vmem>>, vector<1x512xf32>
    tpu.vector_store %arg3[%c6_23, %c0_24], %215 {strides = array<i32>} : memref<7x512xf32, #tpu.memory_space<vmem>>, vector<1x512xf32>,
    return
  }
  func.func @transform_0(%arg0: i32, %arg1: memref<64xf32, #tpu.memory_space<smem>>) -> (i32, i32) {
    %c0_i32 = arith.constant 0 : i32
    %c0_i32_0 = arith.constant 0 : i32
    return %c0_i32, %arg0 : i32, i32
  }
  func.func @transform_1(%arg0: i32, %arg1: memref<64xf32, #tpu.memory_space<smem>>) -> (i32, i32) {
    %c0_i32 = arith.constant 0 : i32
    %c0_i32_0 = arith.constant 0 : i32
    return %c0_i32, %arg0 : i32, i32
  }
}

</mosaic_0001>

<llo_original>
// kernel: tpu_custom_call.1
$region0: #{tpu_custom_call.1}
  #allocation0 [shape = 'u32[]', space=smem, size = 0x4, offset = 0x4, fixed_abs, tag = 'smem constant byte address 0x4 - core index']
  #allocation1 [shape = 'u32[144,128]{1,0:T(1,128)}', space=vmem, size = 0x12000, scoped, tag = 'internal scratch']
  #allocation2 [shape = 's32[1]{0}', space=sflag, size = 0x4, scoped, tag = 'scoped memory for tpu_custom_call.1']
  #allocation3 [shape = 'u8[512]{0}', space=smem, size = 0x200, scoped, tag = 'prefetched SMEM operand 0']
  %s0 = inlined_call_operand.hbm [shape: f32[64], index: 0, kind: input, shape index: {}]
  %s1 = inlined_call_operand.hbm [shape: f32[4,1024], index: 1, kind: input, shape index: {}]
  %s2 = inlined_call_operand.hbm [shape: f32[7,1024], index: 2, kind: output, shape index: {}]
  %s3 = sld [smem:[#allocation0]]
  $region41: #{tpu_custom_call.1} parent=0
    _
  %s5 = ssub.s32 1, %s3
  %s6 = scalar_select 0, %s5, %s3
  %8 = dma.hbm_to_smem %s0, 16, [#allocation3], [#allocation2]
  %9 = dma.done [#allocation2], 16
  %10 = sfence
  $region1: #{tpu_custom_call.1} parent=0
    #allocation4 [shape = 'u8[16384]{0}', space=vmem, size = 0x4000, scoped, tag = 'input window, operand 1']
    #allocation5 [shape = 's32[2]{0}', space=sflag, size = 0x8, scoped, tag = 'scoped memory for tpu_custom_call.1']
    #allocation6 [shape = 's32[2]{0}', space=sflag, size = 0x8, scoped, tag = 'scoped memory for tpu_custom_call.1']
    #allocation7 [shape = 'u8[32768]{0}', space=vmem, size = 0x8000, scoped, tag = 'output window, operand 0']
    %11 = vsyncpa [#allocation5], 0
    %s12 = scalar_lea.sflag [#allocation5], 1
    %13 = vsyncpa %s12, 0
    %14 = vsyncpa [#allocation6], 0
    %s15 = scalar_lea.sflag [#allocation6], 1
    %16 = vsyncpa %s15, 0
    loop: start=0, step=1, limit=4
    $region2: #{tpu_custom_call.1} parent=1 // loop_pre_header
      _
    $region3: #{tpu_custom_call.1} parent=1 // loop_header
      %s18 = sphi 0, %s22
      %p19 = scmp.ge.s32.totalorder %s18, 4
      %s28 = sphi 0, %s30
      %s31 = sphi 0, %s28
      %s32 = sphi 0, %s31
      %s48 = sphi 0, %s32
      %s54 = sphi 0, %s56
      %s57 = sphi 0, %s54
      %s58 = sphi 0, %s57
      %s74 = sphi 0, %s58
    $region4: #{tpu_custom_call.1} parent=1 // loop_header_branch
      %21 = sbr.rel (%p19) target = $region8
    $region5: #{tpu_custom_call.1} parent=1 // loop_body
      %s23 = ssub.s32 %s18, 1
      %s24 = ssub.s32 %s18, 2
      %s25 = sadd.s32 %s18, 1
      %s26 = ssub.s32 %s18, %s25
      %p27 = scmp.eq.s32.totalorder %s26, 0
      %s29 = sadd.s32 %s28, 1
      %s30 = scalar_select %p27, %s28, %s29
      %p33 = pneg %p27
      %p34 = scmp.eq.s32.totalorder %s18, 1
      %p35 = por %p33, %p34
      %p36 = scmp.ne.s32.totalorder %s28, %s31
      %p37 = scmp.eq.s32.totalorder %s18, 0
      %p38 = por %p36, %p37
      %p39 = scmp.ne.s32.totalorder %s28, %s31
      %p40 = scmp.eq.s32.totalorder %s23, 1
      %p41 = por %p39, %p40
      %p42 = scmp.ne.s32.totalorder %s31, %s32
      %p43 = scmp.eq.s32.totalorder %s23, 0
      %p44 = por %p42, %p43
      %p45 = scmp.ne.s32.totalorder %s31, %s32
      %p46 = scmp.eq.s32.totalorder %s24, 1
      %p47 = por %p45, %p46
      %p49 = scmp.ne.s32.totalorder %s32, %s48
      %p50 = scmp.eq.s32.totalorder %s24, 0
      %p51 = por %p49, %p50
      %s52 = ssub.s32 %s18, %s25
      %p53 = scmp.eq.s32.totalorder %s52, 0
      %s55 = sadd.s32 %s54, 1
      %s56 = scalar_select %p53, %s54, %s55
      %p59 = pneg %p53
      %p60 = scmp.eq.s32.totalorder %s18, 1
      %p61 = por %p59, %p60
      %p62 = scmp.ne.s32.totalorder %s54, %s57
      %p63 = scmp.eq.s32.totalorder %s18, 0
      %p64 = por %p62, %p63
      %p65 = scmp.ne.s32.totalorder %s54, %s57
      %p66 = scmp.eq.s32.totalorder %s23, 1
      %p67 = por %p65, %p66
      %p68 = scmp.ne.s32.totalorder %s57, %s58
      %p69 = scmp.eq.s32.totalorder %s23, 0
      %p70 = por %p68, %p69
      %p71 = scmp.ne.s32.totalorder %s57, %s58
      %p72 = scmp.eq.s32.totalorder %s24, 1
      %p73 = por %p71, %p72
      %p75 = scmp.ne.s32.totalorder %s58, %s74
      %p76 = scmp.eq.s32.totalorder %s24, 0
      %p77 = por %p75, %p76
      %p78 = scmp.le.s32.totalorder 1, %s18
      %p79 = scmp.lt.s32.totalorder %s18, 3
      %p80 = pnand %p78, %p79
      %p81 = pneg %p80
      // Predicated region
      $region9: #{tpu_custom_call.1} parent=5 // pred_check
        _
      $region10: #{tpu_custom_call.1} parent=5 // pred_check_branch
        %83 = sbr.rel (%p80) target = $region12
      $region11: #{tpu_custom_call.1} parent=5 // pred_region
        %s84 = ssub.s32 %s18, 1
      $region12: #{tpu_custom_call.1} parent=5 // pred_fallthru
        _
      %p85 = scmp.lt.s32.totalorder %s18, 2
      // Predicated region
      $region13: #{tpu_custom_call.1} parent=5 // pred_check
        %p86 = pneg %p85
      $region14: #{tpu_custom_call.1} parent=5 // pred_check_branch
        %88 = sbr.rel (%p86) target = $region16
      $region15: #{tpu_custom_call.1} parent=5 // pred_region
        // Predicated region
        $region17: #{tpu_custom_call.1} parent=15 // pred_check
          %p89 = pneg %p38
        $region18: #{tpu_custom_call.1} parent=15 // pred_check_branch
          %91 = sbr.rel (%p89) target = $region20
        $region19: #{tpu_custom_call.1} parent=15 // pred_region
          %s92 = sand.u32 %s28, 1
          %s93 = scalar_lea.sflag [#allocation5], %s92
          %s94 = sand.u32 %s28, 1
          %s95 = smul.addr %s94, 16
          %s96 = scalar_lea.vmem [#allocation4], %s95
          %s97 = smul.u32 4, %s18
          %s99 = ssub.s32 256, 256
          %100 = vsyncadd %s93, %s99
          %s101 = smul.addr %s97, 64
          %s102 = scalar_lea.hbm %s1, %s101
          %s104 = sshll.u32 %s96, 4
          %s105 = int_to_ptr.vmem [resolvable:$true] %s104
          %107 = dma.hbm_to_vmem [thread:$0]  %s102, 256, %s105, %s93
        $region20: #{tpu_custom_call.1} parent=15 // pred_fallthru
          _
      $region16: #{tpu_custom_call.1} parent=5 // pred_fallthru
        _
      %p108 = scmp.le.s32.totalorder 1, %s18
      %p109 = scmp.lt.s32.totalorder %s18, 3
      %p110 = pnand %p108, %p109
      %p111 = pneg %p110
      // Predicated region
      $region21: #{tpu_custom_call.1} parent=5 // pred_check
        _
      $region22: #{tpu_custom_call.1} parent=5 // pred_check_branch
        %113 = sbr.rel (%p110) target = $region24
      $region23: #{tpu_custom_call.1} parent=5 // pred_region
        %s114 = ssub.s32 %s18, 1
        %s115 = sand.u32 %s31, 1
        %s116 = scalar_lea.sflag [#allocation5], %s115
        %s117 = sand.u32 %s31, 1
        %s118 = smul.addr %s117, 16
        %s119 = scalar_lea.vmem [#allocation4], %s118
        // Predicated region
        $region25: #{tpu_custom_call.1} parent=23 // pred_check
          %p120 = pneg %p44
        $region26: #{tpu_custom_call.1} parent=23 // pred_check_branch
          %122 = sbr.rel (%p120) target = $region28
        $region27: #{tpu_custom_call.1} parent=23 // pred_region
          %123 = dma.done %s116, 256
        $region28: #{tpu_custom_call.1} parent=23 // pred_fallthru
          _
        %s124 = sand.u32 %s31, 1
        %s125 = scalar_lea.sflag [#allocation5], %s124
        %s126 = sand.u32 %s31, 1
        %s127 = smul.addr %s126, 16
        %s128 = scalar_lea.vmem [#allocation4], %s127
        %p129 = pneg %p44
        %p130 = pneg %p41
        %p131 = pneg %p70
        %p132 = pneg %p67
        %s133 = sand.u32 %s57, 1
        %s134 = scalar_lea.sflag [#allocation6], %s133
        %s135 = sand.u32 %s57, 1
        %s136 = smul.addr %s135, 32
        %s137 = scalar_lea.vmem [#allocation7], %s136
        %s138 = smul.u32 4, %s23
        %s139 = smul.u32 4, %s23
        %v140 = vld [vmem:[%s119] ss:$4 sm:$0xf]
        %s141 = scalar_lea.vmem %s119, 1 [#allocation4]
        %v142 = vld [vmem:[%s141] ss:$4 sm:$0xf]
        %s143 = scalar_lea.vmem %s119, 2 [#allocation4]
        %v144 = vld [vmem:[%s143] ss:$4 sm:$0xf]
        %s145 = scalar_lea.vmem %s119, 3 [#allocation4]
        %v146 = vld [vmem:[%s145] ss:$4 sm:$0xf]
        %s147 = sld [smem:[#allocation3]]
        %v148 = vstv %s147
        %v149 = vmul.f32 %v140, %v148
        %s150 = sld [smem:[#allocation3 + $0x1]]
        %v151 = vstv %s150
        %v152 = vmul.f32 %v142, %v151
        %v153 = vadd.f32 %v149, %v152
        %s154 = sld [smem:[#allocation3 + $0x2]]
        %v155 = vstv %s154
        %v156 = vmul.f32 %v144, %v155
        %v157 = vadd.f32 %v153, %v156
        %s158 = sld [smem:[#allocation3 + $0x3]]
        %v159 = vstv %s158
        %v160 = vmul.f32 %v146, %v159
        %v161 = vadd.f32 %v157, %v160
        %s162 = sld [smem:[#allocation3 + $0x10]]
        %v163 = vstv %s162
        %v164 = vadd.f32 %v161, %v163
        %v165 = vmax.f32 %v164, 0.0
        %s166 = sld [smem:[#allocation3 + $0x4]]
        %v167 = vstv %s166
        %v168 = vmul.f32 %v140, %v167
        %s169 = sld [smem:[#allocation3 + $0x5]]
        %v170 = vstv %s169
        %v171 = vmul.f32 %v142, %v170
        %v172 = vadd.f32 %v168, %v171
        %s173 = sld [smem:[#allocation3 + $0x6]]
        %v174 = vstv %s173
        %v175 = vmul.f32 %v144, %v174
        %v176 = vadd.f32 %v172, %v175
        %s177 = sld [smem:[#allocation3 + $0x7]]
        %v178 = vstv %s177
        %v179 = vmul.f32 %v146, %v178
        %v180 = vadd.f32 %v176, %v179
        %s181 = sld [smem:[#allocation3 + $0x11]]
        %v182 = vstv %s181
        %v183 = vadd.f32 %v180, %v182
        %v184 = vmax.f32 %v183, 0.0
        %s185 = sld [smem:[#allocation3 + $0x8]]
        %v186 = vstv %s185
        %v187 = vmul.f32 %v140, %v186
        %s188 = sld [smem:[#allocation3 + $0x9]]
        %v189 = vstv %s188
        %v190 = vmul.f32 %v142, %v189
        %v191 = vadd.f32 %v187, %v190
        %s192 = sld [smem:[#allocation3 + $0xa]]
        %v193 = vstv %s192
        %v194 = vmul.f32 %v144, %v193
        %v195 = vadd.f32 %v191, %v194
        %s196 = sld [smem:[#allocation3 + $0xb]]
        %v197 = vstv %s196
        %v198 = vmul.f32 %v146, %v197
        %v199 = vadd.f32 %v195, %v198
        %s200 = sld [smem:[#allocation3 + $0x12]]
        %v201 = vstv %s200
        %v202 = vadd.f32 %v199, %v201
        %v203 = vmax.f32 %v202, 0.0
        %s204 = sld [smem:[#allocation3 + $0xc]]
        %v205 = vstv %s204
        %v206 = vmul.f32 %v140, %v205
        %s207 = sld [smem:[#allocation3 + $0xd]]
        %v208 = vstv %s207
        %v209 = vmul.f32 %v142, %v208
        %v210 = vadd.f32 %v206, %v209
        %s211 = sld [smem:[#allocation3 + $0xe]]
        %v212 = vstv %s211
        %v213 = vmul.f32 %v144, %v212
        %v214 = vadd.f32 %v210, %v213
        %s215 = sld [smem:[#allocation3 + $0xf]]
        %v216 = vstv %s215
        %v217 = vmul.f32 %v146, %v216
        %v218 = vadd.f32 %v214, %v217
        %s219 = sld [smem:[#allocation3 + $0x13]]
        %v220 = vstv %s219
        %v221 = vadd.f32 %v218, %v220
        %v222 = vmax.f32 %v221, 0.0
        %s223 = sld [smem:[#allocation3 + $0x14]]
        %v224 = vstv %s223
        %v225 = vmul.f32 %v165, %v224
        %s226 = sld [smem:[#allocation3 + $0x15]]
        %v227 = vstv %s226
        %v228 = vmul.f32 %v184, %v227
        %v229 = vadd.f32 %v225, %v228
        %s230 = sld [smem:[#allocation3 + $0x16]]
        %v231 = vstv %s230
        %v232 = vmul.f32 %v203, %v231
        %v233 = vadd.f32 %v229, %v232
        %s234 = sld [smem:[#allocation3 + $0x17]]
        %v235 = vstv %s234
        %v236 = vmul.f32 %v222, %v235
        %v237 = vadd.f32 %v233, %v236
        %s238 = sld [smem:[#allocation3 + $0x30]]
        %v239 = vstv %s238
        %v240 = vadd.f32 %v237, %v239
        %v241 = vlaneseq
        %vm242 = vcmp.ge.s32.totalorder %v241, 0
        %vm243 = vcmp.lt.s32.totalorder %v241, 512
        %vm244 = vmand %vm242, %vm243
        %245 = vst.msk [vmem:[%s137] ss:$8 sm:$0xf] %vm244, %v240
        %246 = vst.msk [vmem:[%s137] ss:$8 sm:$0x0] %vm244, %v240
        %s247 = sld [smem:[#allocation3 + $0x18]]
        %v248 = vstv %s247
        %v249 = vmul.f32 %v165, %v248
        %s250 = sld [smem:[#allocation3 + $0x19]]
        %v251 = vstv %s250
        %v252 = vmul.f32 %v184, %v251
        %v253 = vadd.f32 %v249, %v252
        %s254 = sld [smem:[#allocation3 + $0x1a]]
        %v255 = vstv %s254
        %v256 = vmul.f32 %v203, %v255
        %v257 = vadd.f32 %v253, %v256
        %s258 = sld [smem:[#allocation3 + $0x1b]]
        %v259 = vstv %s258
        %v260 = vmul.f32 %v222, %v259
        %v261 = vadd.f32 %v257, %v260
        %s262 = sld [smem:[#allocation3 + $0x31]]
        %v263 = vstv %s262
        %v264 = vadd.f32 %v261, %v263
        %s265 = scalar_lea.vmem %s137, 1 [#allocation7]
        %266 = vst.msk [vmem:[%s265] ss:$8 sm:$0xf] %vm244, %v264
        %267 = vst.msk [vmem:[%s265] ss:$8 sm:$0x0] %vm244, %v264
        %s268 = sld [smem:[#allocation3 + $0x1c]]
        %v269 = vstv %s268
        %v270 = vmul.f32 %v165, %v269
        %s271 = sld [smem:[#allocation3 + $0x1d]]
        %v272 = vstv %s271
        %v273 = vmul.f32 %v184, %v272
        %v274 = vadd.f32 %v270, %v273
        %s275 = sld [smem:[#allocation3 + $0x1e]]
        %v276 = vstv %s275
        %v277 = vmul.f32 %v203, %v276
        %v278 = vadd.f32 %v274, %v277
        %s279 = sld [smem:[#allocation3 + $0x1f]]
        %v280 = vstv %s279
        %v281 = vmul.f32 %v222, %v280
        %v282 = vadd.f32 %v278, %v281
        %s283 = sld [smem:[#allocation3 + $0x32]]
        %v284 = vstv %s283
        %v285 = vadd.f32 %v282, %v284
        %s286 = scalar_lea.vmem %s137, 2 [#allocation7]
        %287 = vst.msk [vmem:[%s286] ss:$8 sm:$0xf] %vm244, %v285
        %288 = vst.msk [vmem:[%s286] ss:$8 sm:$0x0] %vm244, %v285
        %s289 = sld [smem:[#allocation3 + $0x20]]
        %v290 = vstv %s289
        %v291 = vmul.f32 %v165, %v290
        %s292 = sld [smem:[#allocation3 + $0x21]]
        %v293 = vstv %s292
        %v294 = vmul.f32 %v184, %v293
        %v295 = vadd.f32 %v291, %v294
        %s296 = sld [smem:[#allocation3 + $0x22]]
        %v297 = vstv %s296
        %v298 = vmul.f32 %v203, %v297
        %v299 = vadd.f32 %v295, %v298
        %s300 = sld [smem:[#allocation3 + $0x23]]
        %v301 = vstv %s300
        %v302 = vmul.f32 %v222, %v301
        %v303 = vadd.f32 %v299, %v302
        %s304 = sld [smem:[#allocation3 + $0x33]]
        %v305 = vstv %s304
        %v306 = vadd.f32 %v303, %v305
        %s307 = scalar_lea.vmem %s137, 3 [#allocation7]
        %308 = vst.msk [vmem:[%s307] ss:$8 sm:$0xf] %vm244, %v306
        %309 = vst.msk [vmem:[%s307] ss:$8 sm:$0x0] %vm244, %v306
        %s310 = sld [smem:[#allocation3 + $0x24]]
        %v311 = vstv %s310
        %v312 = vmul.f32 %v165, %v311
        %s313 = sld [smem:[#allocation3 + $0x25]]
        %v314 = vstv %s313
        %v315 = vmul.f32 %v184, %v314
        %v316 = vadd.f32 %v312, %v315
        %s317 = sld [smem:[#allocation3 + $0x26]]
        %v318 = vstv %s317
        %v319 = vmul.f32 %v203, %v318
        %v320 = vadd.f32 %v316, %v319
        %s321 = sld [smem:[#allocation3 + $0x27]]
        %v322 = vstv %s321
        %v323 = vmul.f32 %v222, %v322
        %v324 = vadd.f32 %v320, %v323
        %s325 = sld [smem:[#allocation3 + $0x34]]
        %v326 = vstv %s325
        %v327 = vadd.f32 %v324, %v326
        %s328 = scalar_lea.vmem %s137, 4 [#allocation7]
        %329 = vst.msk [vmem:[%s328] ss:$8 sm:$0xf] %vm244, %v327
        %330 = vst.msk [vmem:[%s328] ss:$8 sm:$0x0] %vm244, %v327
        %s331 = sld [smem:[#allocation3 + $0x28]]
        %v332 = vstv %s331
        %v333 = vmul.f32 %v165, %v332
        %s334 = sld [smem:[#allocation3 + $0x29]]
        %v335 = vstv %s334
        %v336 = vmul.f32 %v184, %v335
        %v337 = vadd.f32 %v333, %v336
        %s338 = sld [smem:[#allocation3 + $0x2a]]
        %v339 = vstv %s338
        %v340 = vmul.f32 %v203, %v339
        %v341 = vadd.f32 %v337, %v340
        %s342 = sld [smem:[#allocation3 + $0x2b]]
        %v343 = vstv %s342
        %v344 = vmul.f32 %v222, %v343
        %v345 = vadd.f32 %v341, %v344
        %s346 = sld [smem:[#allocation3 + $0x35]]
        %v347 = vstv %s346
        %v348 = vadd.f32 %v345, %v347
        %s349 = scalar_lea.vmem %s137, 5 [#allocation7]
        %350 = vst.msk [vmem:[%s349] ss:$8 sm:$0xf] %vm244, %v348
        %351 = vst.msk [vmem:[%s349] ss:$8 sm:$0x0] %vm244, %v348
        %s352 = sld [smem:[#allocation3 + $0x2c]]
        %v353 = vstv %s352
        %v354 = vmul.f32 %v165, %v353
        %s355 = sld [smem:[#allocation3 + $0x2d]]
        %v356 = vstv %s355
        %v357 = vmul.f32 %v184, %v356
        %v358 = vadd.f32 %v354, %v357
        %s359 = sld [smem:[#allocation3 + $0x2e]]
        %v360 = vstv %s359
        %v361 = vmul.f32 %v203, %v360
        %v362 = vadd.f32 %v358, %v361
        %s363 = sld [smem:[#allocation3 + $0x2f]]
        %v364 = vstv %s363
        %v365 = vmul.f32 %v222, %v364
        %v366 = vadd.f32 %v362, %v365
        %s367 = sld [smem:[#allocation3 + $0x36]]
        %v368 = vstv %s367
        %v369 = vadd.f32 %v366, %v368
        %s370 = scalar_lea.vmem %s137, 6 [#allocation7]
        %371 = vst.msk [vmem:[%s370] ss:$8 sm:$0xf] %vm244, %v369
        %372 = vst.msk [vmem:[%s370] ss:$8 sm:$0x0] %vm244, %v369
        %s373 = sand.u32 %s57, 1
        %s374 = scalar_lea.sflag [#allocation6], %s373
        %s375 = sand.u32 %s57, 1
        %s376 = smul.addr %s375, 32
        %s377 = scalar_lea.vmem [#allocation7], %s376
        // Predicated region
        $region29: #{tpu_custom_call.1} parent=23 // pred_check
          %p378 = pneg %p67
        $region30: #{tpu_custom_call.1} parent=23 // pred_check_branch
          %380 = sbr.rel (%p378) target = $region32
        $region31: #{tpu_custom_call.1} parent=23 // pred_region
          %s381 = smul.u32 4, %s23
          %s383 = ssub.s32 512, 512
          %384 = vsyncadd %s374, %s383
          %s385 = smul.addr %s381, 128
          %s386 = scalar_lea.hbm %s2, %s385
          %s388 = sshll.u32 %s377, 4
          %s389 = int_to_ptr.vmem [resolvable:$true] %s388
          %391 = dma.vmem_to_hbm [thread:$0]  %s389, 512, %s386, %s374
        $region32: #{tpu_custom_call.1} parent=23 // pred_fallthru
          _
      $region24: #{tpu_custom_call.1} parent=5 // pred_fallthru
        _
      %p392 = scmp.le.s32.totalorder 2, %s18
      // Predicated region
      $region33: #{tpu_custom_call.1} parent=5 // pred_check
        %p393 = pneg %p392
      $region34: #{tpu_custom_call.1} parent=5 // pred_check_branch
        %395 = sbr.rel (%p393) target = $region36
      $region35: #{tpu_custom_call.1} parent=5 // pred_region
        %s396 = ssub.s32 %s18, 2
        // Predicated region
        $region37: #{tpu_custom_call.1} parent=35 // pred_check
          %p397 = pneg %p73
        $region38: #{tpu_custom_call.1} parent=35 // pred_check_branch
          %399 = sbr.rel (%p397) target = $region40
        $region39: #{tpu_custom_call.1} parent=35 // pred_region
          %s400 = sand.u32 %s58, 1
          %s401 = scalar_lea.sflag [#allocation6], %s400
          %s402 = sand.u32 %s58, 1
          %s403 = smul.addr %s402, 32
          %s404 = scalar_lea.vmem [#allocation7], %s403
          %405 = dma.done %s401, 512
        $region40: #{tpu_custom_call.1} parent=35 // pred_fallthru
          _
      $region36: #{tpu_custom_call.1} parent=5 // pred_fallthru
        _
    $region6: #{tpu_custom_call.1} parent=1 // loop_footer
      %s22 = sadd.s32 1, %s18
    $region7: #{tpu_custom_call.1} parent=1 // loop_footer_branch
      %17 = sbr.rel target = $region3
    $region8: #{tpu_custom_call.1} parent=1 // loop_exit
      _
    %406 = vsyncpa [#allocation5], 1
    %s407 = scalar_lea.sflag [#allocation5], 1
    %408 = vsyncpa %s407, 1
    %409 = vsyncpa [#allocation6], 1
    %s410 = scalar_lea.sflag [#allocation6], 1
    %411 = vsyncpa %s410, 1

</llo_original>
